<compile_context>
chip_gen: v7x
topology: tpu7x:2x2x1
jax: 0.10.0
libtpu: 0.0.40
codegen_flags: <defaults>
</compile_context>

<pallas_src>
import math

import jax
import jax.numpy as jnp
import numpy as np
from jax.experimental import pallas as pl
from jax.experimental.pallas import tpu as pltpu


def _bilinear_weight_matrix(in_size: int, out_size: int, scale: float) -> jnp.ndarray:
    """Dense (out_size, in_size) weights reproducing PyTorch upsample_bilinear2d
    with align_corners=False, recompute_scale_factor=False.  Index math in f64."""
    rscale = 1.0 / float(scale)                      # PyTorch uses 1/scale_factor
    dst = np.arange(out_size, dtype=np.float64)
    src = np.maximum(rscale * (dst + 0.5) - 0.5, 0.0)  # area_pixel_compute_source_index
    x0f = np.floor(src)
    frac = np.clip(src - x0f, 0.0, 1.0)
    x0 = np.clip(x0f.astype(np.int64), 0, in_size - 1)
    x1 = np.minimum(x0 + 1, in_size - 1)
    w = np.zeros((out_size, in_size), np.float64)
    rows = np.arange(out_size)
    np.add.at(w, (rows, x0), 1.0 - frac)             # x0==x1 rows still sum to 1.0
    np.add.at(w, (rows, x1), frac)
    return jnp.asarray(w, dtype=jnp.float32)


def _resize_kernel(wh_ref, wwc_ref, img_ref, out_ref):
    # wh_ref : (TOH, H)      row-interpolation weights for this output-row tile
    # wwc_ref: (W*C, OW*C)   column weights kron I_C (channels stay in lanes)
    # img_ref: (1, H, W*C)   one batch, full plane, channels folded into lanes
    # out_ref: (1, TOH, OW*C)
    tmp = jnp.dot(wh_ref[...], img_ref[0],
                  preferred_element_type=jnp.float32)          # (TOH, W*C)
    out = jnp.dot(tmp.astype(wwc_ref.dtype), wwc_ref[...],
                  preferred_element_type=jnp.float32)          # (TOH, OW*C)
    out_ref[0] = out.astype(out_ref.dtype)


def resize_bilinear(image_bhwc: jnp.ndarray, scale: float, *,
                    compute_dtype=jnp.float32, max_oh_tile: int = 512) -> jnp.ndarray:
    """image_bhwc: (B, H, W, C) -> (B, OH, OW, C) float32.

    compute_dtype=jnp.bfloat16 gives ~2-3x MXU throughput and half the DMA
    bytes (f32 accumulation is kept); default f32 matches PyTorch tightly.
    """
    B, H, W, C = image_bhwc.shape
    OH = int(math.floor(H * scale))
    OW = int(math.floor(W * scale))
    WC, OWC = W * C, OW * C

    wh = _bilinear_weight_matrix(H, OH, scale).astype(compute_dtype)            # (OH, H)
    ww = _bilinear_weight_matrix(W, OW, scale)                                  # (OW, W)
    # Column interpolation as one lane-dense matmul over the interleaved (W*C)
    # axis: wwc[w*C + c, ow*C + c'] = ww[ow, w] * (c == c').
    wwc = jnp.kron(ww.T, jnp.eye(C, dtype=jnp.float32)).astype(compute_dtype)   # (W*C, OW*C)

    # Free row-major view — channels stay in the minor dim, no HBM transpose.
    x = image_bhwc.reshape(B, H, WC).astype(compute_dtype)

    # Output-row tiling bounds the live intermediate/output tiles (v7x VMEM).
    TOH = OH if OH <= max_oh_tile else max_oh_tile
    n_oh = pl.cdiv(OH, TOH)

    itemsize = jnp.dtype(compute_dtype).itemsize
    # double-buffered blocks + f32 intermediate/accumulator (rough estimate)
    vmem_est = (2 * (TOH * H + WC * OWC + H * WC) * itemsize
                + 2 * TOH * OWC * 4 + TOH * WC * 4)
    compiler_kwargs = dict(dimension_semantics=("parallel", "parallel"))
    if vmem_est > 8 * 1024 * 1024:
        # raise scoped VMEM only when needed; stay under v7x's 64 MiB physical
        compiler_kwargs["vmem_limit_bytes"] = int(min(2 * vmem_est, 60 * 1024 * 1024))

    # TODO(synk): for very large planes, fetch only the ~ceil(TOH/scale)+2 input
    # rows each OH tile touches (banded wh + scalar-prefetched row offsets) and
    # tile OW*C to multiples of 128; full-H blocks are re-used across OH tiles
    # here, which is sufficient at these sizes.
    out = pl.pallas_call(
        _resize_kernel,
        out_shape=jax.ShapeDtypeStruct((B, OH, OWC), jnp.float32),
        grid_spec=pltpu.PrefetchScalarGridSpec(
            num_scalar_prefetch=0,
            grid=(B, n_oh),                        # OH-tile axis is fastest: the
            in_specs=[                             # image block is not re-DMAed.
                pl.BlockSpec((TOH, H), lambda b, t: (t, 0)),
                pl.BlockSpec((WC, OWC), lambda b, t: (0, 0)),
                pl.BlockSpec((1, H, WC), lambda b, t: (b, 0, 0)),
            ],
            out_specs=pl.BlockSpec((1, TOH, OWC), lambda b, t: (b, t, 0)),
        ),
        compiler_params=pltpu.CompilerParams(**compiler_kwargs),
    )(wh, wwc, x)

    # Free view back to BHWC (module's external layout).
    return out.reshape(B, OH, OW, C)


def _resize_reference(image_bhwc: jnp.ndarray, scale: float) -> jnp.ndarray:
    """Pure-JAX reference on BHWC with the same separable weights."""
    B, H, W, C = image_bhwc.shape
    OH = int(math.floor(H * scale))
    OW = int(math.floor(W * scale))
    wh = _bilinear_weight_matrix(H, OH, scale)
    ww = _bilinear_weight_matrix(W, OW, scale)
    return jnp.einsum("oh,pw,bhwc->bopc", wh, ww, image_bhwc.astype(jnp.float32))


if __name__ == "__main__":
    key = jax.random.PRNGKey(0)
    B, H, W, C = 2, 16, 16, 4
    scale = 1.5
    image = jax.random.normal(key, (B, H, W, C), dtype=jnp.float32)

    out = jax.block_until_ready(resize_bilinear(image, scale))
    ref = jax.block_until_ready(_resize_reference(image, scale))

    OH, OW = int(math.floor(H * scale)), int(math.floor(W * scale))
    assert out.shape == (B, OH, OW, C)
    assert jnp.allclose(out, ref, atol=1e-4, rtol=1e-4)

    print("KERNEL_OK")
</pallas_src>

<mosaic_0001>
module attributes {stable_mosaic.version = 11 : i64} {
  func.func @_resize_kernel(%arg0: i32, %arg1: i32, %arg2: memref<24x16xf32, #tpu.memory_space<vmem>>, %arg3: memref<64x96xf32, #tpu.memory_space<vmem>>, %arg4: memref<1x16x64xf32, #tpu.memory_space<vmem>>, %arg5: memref<1x24x96xf32, #tpu.memory_space<vmem>>) attributes {dimension_semantics = [#tpu.dimension_semantics<parallel>, #tpu.dimension_semantics<parallel>], iteration_bounds = array<i64: 2, 1>, scalar_prefetch = 0 : i64, scratch_operands = 0 : i64, tpu.core_type = #tpu.core_type<tc>, window_params = [{transform_indices = @transform_0, window_bounds = array<i64: 24, 16>}, {pipeline_mode = #tpu.pipeline_mode<synchronous>, transform_indices = @transform_1, window_bounds = array<i64: 64, 96>}, {transform_indices = @transform_2, window_bounds = array<i64: 1, 16, 64>}, {transform_indices = @transform_3, window_bounds = array<i64: 1, 24, 96>}]} {
    %c0 = arith.constant 0 : index
    %c0_0 = arith.constant 0 : index
    %0 = vector.load %arg2[%c0, %c0_0] : memref<24x16xf32, #tpu.memory_space<vmem>>, vector<24x16xf32>
    %c0_1 = arith.constant 0 : index
    %c0_2 = arith.constant 0 : index
    %c0_3 = arith.constant 0 : index
    %1 = vector.load %arg4[%c0_1, %c0_2, %c0_3] : memref<1x16x64xf32, #tpu.memory_space<vmem>>, vector<1x16x64xf32>
    %2 = vector.shape_cast %1 : vector<1x16x64xf32> to vector<16x64xf32>
    %cst = arith.constant dense<0.000000e+00> : vector<24x64xf32>
    %3 = tpu.matmul %0, %2, %cst {dimension_numbers = #tpu.dot_dimension_numbers<[1], [0], [0], [1], [0, 0, 1, 1], [], []>} : vector<24x16xf32>, vector<16x64xf32>, vector<24x64xf32> -> vector<24x64xf32>
    %c0_4 = arith.constant 0 : index
    %c0_5 = arith.constant 0 : index
    %4 = vector.load %arg3[%c0_4, %c0_5] : memref<64x96xf32, #tpu.memory_space<vmem>>, vector<64x96xf32>
    %cst_6 = arith.constant dense<0.000000e+00> : vector<24x96xf32>
    %5 = tpu.matmul %3, %4, %cst_6 {dimension_numbers = #tpu.dot_dimension_numbers<[1], [0], [0], [1], [0, 0, 1, 1], [], []>} : vector<24x64xf32>, vector<64x96xf32>, vector<24x96xf32> -> vector<24x96xf32>
    %c0_7 = arith.constant 0 : index
    %c0_8 = arith.constant 0 : index
    %c0_9 = arith.constant 0 : index
    %6 = vector.load %arg5[%c0_7, %c0_8, %c0_9] : memref<1x24x96xf32, #tpu.memory_space<vmem>>, vector<1x24x96xf32>
    %7 = vector.shape_cast %6 : vector<1x24x96xf32> to vector<24x96xf32>
    %8 = vector.shape_cast %5 : vector<24x96xf32> to vector<1x24x96xf32>
    tpu.vector_store %arg5[%c0_7, %c0_8, %c0_9], %8 {strides = array<i32>} : memref<1x24x96xf32, #tpu.memory_space<vmem>>, vector<1x24x96xf32>,
    return
  }
  func.func @transform_0(%arg0: i32, %arg1: i32) -> (i32, i32) {
    %c0_i32 = arith.constant 0 : i32
    %c0_i32_0 = arith.constant 0 : i32
    return %arg1, %c0_i32 : i32, i32
  }
  func.func @transform_1(%arg0: i32, %arg1: i32) -> (i32, i32) {
    %c0_i32 = arith.constant 0 : i32
    %c0_i32_0 = arith.constant 0 : i32
    %c0_i32_1 = arith.constant 0 : i32
    return %c0_i32, %c0_i32_0 : i32, i32
  }
  func.func @transform_2(%arg0: i32, %arg1: i32) -> (i32, i32, i32) {
    %c0_i32 = arith.constant 0 : i32
    %c0_i32_0 = arith.constant 0 : i32
    %c0_i32_1 = arith.constant 0 : i32
    return %arg0, %c0_i32, %c0_i32_0 : i32, i32, i32
  }
  func.func @transform_3(%arg0: i32, %arg1: i32) -> (i32, i32, i32) {
    %c0_i32 = arith.constant 0 : i32
    %c0_i32_0 = arith.constant 0 : i32
    return %arg0, %arg1, %c0_i32 : i32, i32, i32
  }
}

</mosaic_0001>

<llo_original>
// kernel: tpu_custom_call.1
$region0: #{tpu_custom_call.1}
  #allocation0 [shape = 'u32[]', space=smem, size = 0x4, offset = 0x4, fixed_abs, tag = 'smem constant byte address 0x4 - core index']
  #allocation1 [shape = 'u32[144,128]{1,0:T(1,128)}', space=vmem, size = 0x12000, scoped, tag = 'internal scratch']
  %s0 = inlined_call_operand.vmem [shape: f32[24,16], index: 0, kind: input, shape index: {}]
  %s1 = inlined_call_operand.hbm [shape: f32[64,96], index: 1, kind: input, shape index: {}]
  %s2 = inlined_call_operand.vmem [shape: f32[2,16,64], index: 2, kind: input, shape index: {}]
  %s3 = inlined_call_operand.hbm [shape: f32[2,24,96], index: 3, kind: output, shape index: {}]
  %s4 = sld [smem:[#allocation0]]
  $region49: #{tpu_custom_call.1} parent=0
    _
  %s6 = ssub.s32 1, %s4
  %s7 = scalar_select 0, %s6, %s4
  $region1: #{tpu_custom_call.1} parent=0
    #allocation2 [shape = 'u8[32768]{0}', space=vmem, size = 0x8000, scoped, tag = 'input window, operand 1, single buffered']
    #allocation3 [shape = 's32[2]{0}', space=sflag, size = 0x8, scoped, tag = 'scoped memory for tpu_custom_call.1']
    #allocation4 [shape = 's32[2]{0}', space=sflag, size = 0x8, scoped, tag = 'scoped memory for tpu_custom_call.1']
    #allocation5 [shape = 'u8[24576]{0}', space=vmem, size = 0x6000, scoped, tag = 'output window, operand 0']
    %8 = vsyncpa [#allocation3], 0
    %9 = vsyncpa [#allocation4], 0
    %s10 = scalar_lea.sflag [#allocation4], 1
    %11 = vsyncpa %s10, 0
    loop: start=0, step=1, limit=4
    $region2: #{tpu_custom_call.1} parent=1 // loop_pre_header
      _
    $region3: #{tpu_custom_call.1} parent=1 // loop_header
      %s13 = sphi 0, %s17
      %p14 = scmp.ge.s32.totalorder %s13, 4
      %s20 = sphi 0, %s32
      %s21 = sphi 0, %s28
      %s22 = sphi 0, %s20
      %s23 = sphi 0, %s21
      %s24 = sphi 0, %s22
      %s25 = sphi 0, %s23
      %s35 = sphi 0, %s37
      %s38 = sphi 0, %s35
      %s39 = sphi 0, %s38
      %s55 = sphi 0, %s39
      %s59 = sphi 0, %s59
      %s61 = sphi 0, %s59
      %s62 = sphi 0, %s61
      %s76 = sphi 0, %s62
      %s82 = sphi 0, %s84
      %s85 = sphi 0, %s82
      %s86 = sphi 0, %s85
      %s102 = sphi 0, %s86
      %s110 = sphi 0, %s112
      %s113 = sphi 0, %s110
      %s114 = sphi 0, %s113
      %s130 = sphi 0, %s114
    $region4: #{tpu_custom_call.1} parent=1 // loop_header_branch
      %16 = sbr.rel (%p14) target = $region8
    $region5: #{tpu_custom_call.1} parent=1 // loop_body
      %s18 = ssub.s32 %s13, 1
      %s19 = ssub.s32 %s13, 2
      %s26 = sadd.s32 1, %s21
      %p27 = scmp.ge.s32.totalorder %s26, 1
      %s28 = scalar_select %p27, 0, %s26
      %s29 = sadd.s32 1, %s20
      %s30 = scalar_select %p27, %s29, %s20
      %p31 = scmp.ge.s32.totalorder %s30, 2
      %s32 = scalar_select %p31, 0, %s30
      %s33 = ssub.s32 %s21, %s28
      %p34 = scmp.eq.s32.totalorder %s33, 0
      %s36 = sadd.s32 %s35, 1
      %s37 = scalar_select %p34, %s35, %s36
      %p40 = pneg %p34
      %p41 = scmp.eq.s32.totalorder %s13, 1
      %p42 = por %p40, %p41
      %p43 = scmp.ne.s32.totalorder %s35, %s38
      %p44 = scmp.eq.s32.totalorder %s13, 0
      %p45 = por %p43, %p44
      %p46 = scmp.ne.s32.totalorder %s35, %s38
      %p47 = scmp.eq.s32.totalorder %s18, 1
      %p48 = por %p46, %p47
      %p49 = scmp.ne.s32.totalorder %s38, %s39
      %p50 = scmp.eq.s32.totalorder %s18, 0
      %p51 = por %p49, %p50
      %p52 = scmp.ne.s32.totalorder %s38, %s39
      %p53 = scmp.eq.s32.totalorder %s19, 1
      %p54 = por %p52, %p53
      %p56 = scmp.ne.s32.totalorder %s39, %s55
      %p57 = scmp.eq.s32.totalorder %s19, 0
      %p58 = por %p56, %p57
      %s60 = sadd.s32 %s59, 1
      %p63 = scmp.eq.s32.totalorder %s13, 1
      %p64 = scmp.ne.s32.totalorder %s59, %s61
      %p65 = scmp.eq.s32.totalorder %s13, 0
      %p66 = por %p64, %p65
      %p67 = scmp.ne.s32.totalorder %s59, %s61
      %p68 = scmp.eq.s32.totalorder %s18, 1
      %p69 = por %p67, %p68
      %p70 = scmp.ne.s32.totalorder %s61, %s62
      %p71 = scmp.eq.s32.totalorder %s18, 0
      %p72 = por %p70, %p71
      %p73 = scmp.ne.s32.totalorder %s61, %s62
      %p74 = scmp.eq.s32.totalorder %s19, 1
      %p75 = por %p73, %p74
      %p77 = scmp.ne.s32.totalorder %s62, %s76
      %p78 = scmp.eq.s32.totalorder %s19, 0
      %p79 = por %p77, %p78
      %s80 = ssub.s32 %s20, %s32
      %p81 = scmp.eq.s32.totalorder %s80, 0
      %s83 = sadd.s32 %s82, 1
      %s84 = scalar_select %p81, %s82, %s83
      %p87 = pneg %p81
      %p88 = scmp.eq.s32.totalorder %s13, 1
      %p89 = por %p87, %p88
      %p90 = scmp.ne.s32.totalorder %s82, %s85
      %p91 = scmp.eq.s32.totalorder %s13, 0
      %p92 = por %p90, %p91
      %p93 = scmp.ne.s32.totalorder %s82, %s85
      %p94 = scmp.eq.s32.totalorder %s18, 1
      %p95 = por %p93, %p94
      %p96 = scmp.ne.s32.totalorder %s85, %s86
      %p97 = scmp.eq.s32.totalorder %s18, 0
      %p98 = por %p96, %p97
      %p99 = scmp.ne.s32.totalorder %s85, %s86
      %p100 = scmp.eq.s32.totalorder %s19, 1
      %p101 = por %p99, %p100
      %p103 = scmp.ne.s32.totalorder %s86, %s102
      %p104 = scmp.eq.s32.totalorder %s19, 0
      %p105 = por %p103, %p104
      %s106 = ssub.s32 %s20, %s32
      %s107 = ssub.s32 %s21, %s28
      %s108 = sor.u32 %s106, %s107
      %p109 = scmp.eq.s32.totalorder %s108, 0
      %s111 = sadd.s32 %s110, 1
      %s112 = scalar_select %p109, %s110, %s111
      %p115 = pneg %p109
      %p116 = scmp.eq.s32.totalorder %s13, 1
      %p117 = por %p115, %p116
      %p118 = scmp.ne.s32.totalorder %s110, %s113
      %p119 = scmp.eq.s32.totalorder %s13, 0
      %p120 = por %p118, %p119
      %p121 = scmp.ne.s32.totalorder %s110, %s113
      %p122 = scmp.eq.s32.totalorder %s18, 1
      %p123 = por %p121, %p122
      %p124 = scmp.ne.s32.totalorder %s113, %s114
      %p125 = scmp.eq.s32.totalorder %s18, 0
      %p126 = por %p124, %p125
      %p127 = scmp.ne.s32.totalorder %s113, %s114
      %p128 = scmp.eq.s32.totalorder %s19, 1
      %p129 = por %p127, %p128
      %p131 = scmp.ne.s32.totalorder %s114, %s130
      %p132 = scmp.eq.s32.totalorder %s19, 0
      %p133 = por %p131, %p132
      %p134 = scmp.le.s32.totalorder 1, %s13
      %p135 = scmp.lt.s32.totalorder %s13, 3
      %p136 = pnand %p134, %p135
      %p137 = pneg %p136
      // Predicated region
      $region9: #{tpu_custom_call.1} parent=5 // pred_check
        _
      $region10: #{tpu_custom_call.1} parent=5 // pred_check_branch
        %139 = sbr.rel (%p136) target = $region12
      $region11: #{tpu_custom_call.1} parent=5 // pred_region
        %s140 = ssub.s32 %s13, 1
        // Predicated region
        $region13: #{tpu_custom_call.1} parent=11 // pred_check
          %p141 = pneg %p51
        $region14: #{tpu_custom_call.1} parent=11 // pred_check_branch
          %143 = sbr.rel (%p141) target = $region16
        $region15: #{tpu_custom_call.1} parent=11 // pred_region
          %s144 = smul.u32 3, %s23
          %p145 = scmp.lt.s32.totalorder %s144, 2
          %s146 = scalar_select %p145, %s144, 2
          %s147 = smul.addr %s146, 8
          %s148 = scalar_lea.vmem %s0, %s147
          %s149 = smul.u32 3, %s23
        $region16: #{tpu_custom_call.1} parent=11 // pred_fallthru
          _
        // Predicated region
        $region17: #{tpu_custom_call.1} parent=11 // pred_check
          %p150 = pneg %p72
        $region18: #{tpu_custom_call.1} parent=11 // pred_check_branch
          %152 = sbr.rel (%p150) target = $region20
        $region19: #{tpu_custom_call.1} parent=11 // pred_region
          %s154 = ssub.s32 1024, 1024
          %155 = vsyncadd [#allocation3], %s154
          %s156 = sshll.u32 [#allocation2], 4
          %s157 = int_to_ptr.vmem [resolvable:$true] %s156
          %162 = dma.hbm_to_vmem [thread:$0]  %s1, 1024, %s157, [#allocation3], 128, 128, 8
        $region20: #{tpu_custom_call.1} parent=11 // pred_fallthru
          _
      $region12: #{tpu_custom_call.1} parent=5 // pred_fallthru
        _
      %p163 = scmp.lt.s32.totalorder %s13, 2
      // Predicated region
      $region21: #{tpu_custom_call.1} parent=5 // pred_check
        %p164 = pneg %p163
      $region22: #{tpu_custom_call.1} parent=5 // pred_check_branch
        %166 = sbr.rel (%p164) target = $region24
      $region23: #{tpu_custom_call.1} parent=5 // pred_region
        // Predicated region
        $region25: #{tpu_custom_call.1} parent=23 // pred_check
          %p167 = pneg %p92
        $region26: #{tpu_custom_call.1} parent=23 // pred_check_branch
          %169 = sbr.rel (%p167) target = $region28
        $region27: #{tpu_custom_call.1} parent=23 // pred_region
          %p170 = scmp.lt.s32.totalorder %s20, 1
          %s171 = scalar_select %p170, %s20, 1
          %s172 = smul.addr %s171, 2
          %s173 = smul.addr %s172, 8
          %s174 = scalar_lea.vmem %s2, %s173
        $region28: #{tpu_custom_call.1} parent=23 // pred_fallthru
          _
      $region24: #{tpu_custom_call.1} parent=5 // pred_fallthru
        _
      %p175 = scmp.le.s32.totalorder 1, %s13
      %p176 = scmp.lt.s32.totalorder %s13, 3
      %p177 = pnand %p175, %p176
      %p178 = pneg %p177
      // Predicated region
      $region29: #{tpu_custom_call.1} parent=5 // pred_check
        _
      $region30: #{tpu_custom_call.1} parent=5 // pred_check_branch
        %180 = sbr.rel (%p177) target = $region32
      $region31: #{tpu_custom_call.1} parent=5 // pred_region
        %s181 = ssub.s32 %s13, 1
        // Predicated region
        $region33: #{tpu_custom_call.1} parent=31 // pred_check
          %p182 = pneg %p72
        $region34: #{tpu_custom_call.1} parent=31 // pred_check_branch
          %184 = sbr.rel (%p182) target = $region36
        $region35: #{tpu_custom_call.1} parent=31 // pred_region
          %185 = dma.done [#allocation3], 1024
        $region36: #{tpu_custom_call.1} parent=31 // pred_fallthru
          _
        %s186 = smul.u32 3, %s23
        %p187 = scmp.lt.s32.totalorder %s186, 2
        %s188 = scalar_select %p187, %s186, 2
        %s189 = smul.addr %s188, 8
        %s190 = scalar_lea.vmem %s0, %s189
        %p191 = pneg %p51
        %p192 = pneg %p48
        %p193 = pneg %p72
        %p194 = pneg %p69
        %p195 = scmp.lt.s32.totalorder %s22, 1
        %s196 = scalar_select %p195, %s22, 1
        %s197 = smul.addr %s196, 2
        %s198 = smul.addr %s197, 8
        %s199 = scalar_lea.vmem %s2, %s198
        %p200 = pneg %p98
        %p201 = pneg %p95
        %p202 = pneg %p126
        %p203 = pneg %p123
        %s204 = sand.u32 %s113, 1
        %s205 = scalar_lea.sflag [#allocation4], %s204
        %s206 = sand.u32 %s113, 1
        %s207 = smul.addr %s206, 24
        %s208 = scalar_lea.vmem [#allocation5], %s207
        %s209 = smul.u32 3, %s23
        %p210 = scmp.lt.s32.totalorder %s209, 2
        %s211 = scalar_select %p210, %s209, 2
        %s212 = smul.addr %s211, 8
        %s213 = scalar_lea.vmem %s0, %s212
        %s214 = smul.u32 3, %s23
        %p215 = scmp.lt.s32.totalorder %s22, 1
        %s216 = scalar_select %p215, %s22, 1
        %s217 = smul.addr %s216, 2
        %s218 = smul.addr %s217, 8
        %s219 = scalar_lea.vmem %s2, %s218
        %s220 = smul.u32 3, %s23
        %v221 = vld [vmem:[%s213] sm:$0xff]
        %v222 = vld [vmem:[%s213 + $0x8] sm:$0xff]
        %v223 = vld [vmem:[%s213 + $0x10] sm:$0xff]
        %v224 = vld [vmem:[%s219] sm:$0xff]
        %v225 = vld [vmem:[%s219 + $0x8] sm:$0xff]
        %vm226 = vcmask 130048
        %v228 = vsel %vm226, %v221, 0
        %v231 = vsel %vm226, %v222, 0
        %v234 = vsel %vm226, %v223, 0
        %236 = vmatprep.subr.mxu0 0.0
        %237 = vmatpush1.msra.mxu0 %v224
        %238 = vmatprep.subr.mxu0 0.0
        %239 = vmatpush1.msra.mxu0 %v225
        %240 = vmatprep.subr.mxu0 0.0
        %241 = vmatpush1.msra.mxu0 0.0
        %242 = vmatprep.subr.mxu0 0.0
        %243 = vmatpush1.msra.mxu0 0.0
        %244 = vmatprep.subr.mxu0 0.0
        %245 = vmatpush1.msra.mxu0 0.0
        %246 = vmatprep.subr.mxu0 0.0
        %247 = vmatpush1.msra.mxu0 0.0
        %248 = vmatprep.subr.mxu0 0.0
        %249 = vmatpush1.msra.mxu0 0.0
        %250 = vmatprep.subr.mxu0 0.0
        %251 = vmatpush1.msra.mxu0 0.0
        %252 = vmatprep.subr.mxu0 0.0
        %253 = vmatpush1.msra.mxu0 0.0
        %254 = vmatprep.subr.mxu0 0.0
        %255 = vmatpush1.msra.mxu0 0.0
        %256 = vmatprep.subr.mxu0 0.0
        %257 = vmatpush1.msra.mxu0 0.0
        %258 = vmatprep.subr.mxu0 0.0
        %259 = vmatpush1.msra.mxu0 0.0
        %260 = vmatprep.subr.mxu0 0.0
        %261 = vmatpush1.msra.mxu0 0.0
        %262 = vmatprep.subr.mxu0 0.0
        %263 = vmatpush1.msra.mxu0 0.0
        %264 = vmatprep.subr.mxu0 0.0
        %265 = vmatpush1.msra.mxu0 0.0
        %266 = vmatprep.subr.mxu0 0.0
        %267 = vmatpush1.msra.mxu0 0.0
        %268 = vmatprep.subr.mxu0 0.0
        %269 = vmatpush1.msra.mxu0 0.0
        %270 = vmatprep.subr.mxu0 0.0
        %271 = vmatpush1.msra.mxu0 0.0
        %272 = vmatprep.subr.mxu0 0.0
        %273 = vmatpush1.msra.mxu0 0.0
        %274 = vmatprep.subr.mxu0 0.0
        %275 = vmatpush1.msra.mxu0 0.0
        %276 = vmatprep.subr.mxu0 0.0
        %277 = vmatpush1.msra.mxu0 0.0
        %278 = vmatprep.subr.mxu0 0.0
        %279 = vmatpush1.msra.mxu0 0.0
        %280 = vmatprep.subr.mxu0 0.0
        %281 = vmatpush1.msra.mxu0 0.0
        %282 = vmatprep.subr.mxu0 0.0
        %283 = vmatpush1.msra.mxu0 0.0
        %284 = vmatprep.subr.mxu0 0.0
        %285 = vmatpush1.msra.mxu0 0.0
        %286 = vmatprep.subr.mxu0 0.0
        %287 = vmatpush1.msra.mxu0 0.0
        %288 = vmatprep.subr.mxu0 0.0
        %289 = vmatpush1.msra.mxu0 0.0
        %290 = vmatprep.subr.mxu0 0.0
        %291 = vmatpush1.msra.mxu0 0.0
        %292 = vmatprep.subr.mxu0 0.0
        %293 = vmatpush1.msra.mxu0 0.0
        %294 = vmatprep.subr.mxu0 0.0
        %295 = vmatpush1.msra.mxu0 0.0
        %296 = vmatprep.subr.mxu0 0.0
        %297 = vmatpush1.msra.mxu0 0.0
        %298 = vmatprep.subr.mxu0 0.0
        %299 = vmatpush1.msra.mxu0 0.0
        %300 = vmatprep.mubr.f32.mxu0 0.0
        %301 = vmatmul.mubr.f32.gmra.mrb[0].mxu0 %v228
        %v302 = vpop.f32.mrb[0].mxu0
        %v303 = vadd.f32 0.0, %v302
        %v304 = vpop.f32.mrb[0].mxu0
        %305 = vmatprep.mubr.f32.mxu0 0.0
        %306 = vmatmul.mubr.f32.gmra.mrb[0].mxu0 %v231
        %v307 = vpop.f32.mrb[0].mxu0
        %v308 = vadd.f32 0.0, %v307
        %v309 = vpop.f32.mrb[0].mxu0
        %310 = vmatprep.mubr.f32.mxu0 0.0
        %311 = vmatmul.mubr.f32.gmra.mrb[0].mxu0 %v234
        %v312 = vpop.f32.mrb[0].mxu0
        %v313 = vadd.f32 0.0, %v312
        %v314 = vpop.f32.mrb[0].mxu0
        %315 = vdwg.mxu0
        %v316 = vld [vmem:[#allocation2] sm:$0xff]
        %v317 = vld [vmem:[#allocation2 + $0x8] sm:$0xff]
        %v318 = vld [vmem:[#allocation2 + $0x10] sm:$0xff]
        %v319 = vld [vmem:[#allocation2 + $0x18] sm:$0xff]
        %v320 = vld [vmem:[#allocation2 + $0x20] sm:$0xff]
        %v321 = vld [vmem:[#allocation2 + $0x28] sm:$0xff]
        %v322 = vld [vmem:[#allocation2 + $0x30] sm:$0xff]
        %v323 = vld [vmem:[#allocation2 + $0x38] sm:$0xff]
        %vm324 = vcmask 523264
        %v326 = vsel %vm324, %v303, 0
        %v329 = vsel %vm324, %v308, 0
        %v332 = vsel %vm324, %v313, 0
        %334 = vmatprep.subr.mxu0 0.0
        %335 = vmatpush1.msra.mxu0 %v316
        %336 = vmatprep.subr.mxu0 0.0
        %337 = vmatpush1.msra.mxu0 %v317
        %338 = vmatprep.subr.mxu0 0.0
        %339 = vmatpush1.msra.mxu0 %v318
        %340 = vmatprep.subr.mxu0 0.0
        %341 = vmatpush1.msra.mxu0 %v319
        %342 = vmatprep.subr.mxu0 0.0
        %343 = vmatpush1.msra.mxu0 %v320
        %344 = vmatprep.subr.mxu0 0.0
        %345 = vmatpush1.msra.mxu0 %v321
        %346 = vmatprep.subr.mxu0 0.0
        %347 = vmatpush1.msra.mxu0 %v322
        %348 = vmatprep.subr.mxu0 0.0
        %349 = vmatpush1.msra.mxu0 %v323
        %350 = vmatprep.subr.mxu0 0.0
        %351 = vmatpush1.msra.mxu0 0.0
        %352 = vmatprep.subr.mxu0 0.0
        %353 = vmatpush1.msra.mxu0 0.0
        %354 = vmatprep.subr.mxu0 0.0
        %355 = vmatpush1.msra.mxu0 0.0
        %356 = vmatprep.subr.mxu0 0.0
        %357 = vmatpush1.msra.mxu0 0.0
        %358 = vmatprep.subr.mxu0 0.0
        %359 = vmatpush1.msra.mxu0 0.0
        %360 = vmatprep.subr.mxu0 0.0
        %361 = vmatpush1.msra.mxu0 0.0
        %362 = vmatprep.subr.mxu0 0.0
        %363 = vmatpush1.msra.mxu0 0.0
        %364 = vmatprep.subr.mxu0 0.0
        %365 = vmatpush1.msra.mxu0 0.0
        %366 = vmatprep.subr.mxu0 0.0
        %367 = vmatpush1.msra.mxu0 0.0
        %368 = vmatprep.subr.mxu0 0.0
        %369 = vmatpush1.msra.mxu0 0.0
        %370 = vmatprep.subr.mxu0 0.0
        %371 = vmatpush1.msra.mxu0 0.0
        %372 = vmatprep.subr.mxu0 0.0
        %373 = vmatpush1.msra.mxu0 0.0
        %374 = vmatprep.subr.mxu0 0.0
        %375 = vmatpush1.msra.mxu0 0.0
        %376 = vmatprep.subr.mxu0 0.0
        %377 = vmatpush1.msra.mxu0 0.0
        %378 = vmatprep.subr.mxu0 0.0
        %379 = vmatpush1.msra.mxu0 0.0
        %380 = vmatprep.subr.mxu0 0.0
        %381 = vmatpush1.msra.mxu0 0.0
        %382 = vmatprep.subr.mxu0 0.0
        %383 = vmatpush1.msra.mxu0 0.0
        %384 = vmatprep.subr.mxu0 0.0
        %385 = vmatpush1.msra.mxu0 0.0
        %386 = vmatprep.subr.mxu0 0.0
        %387 = vmatpush1.msra.mxu0 0.0
        %388 = vmatprep.subr.mxu0 0.0
        %389 = vmatpush1.msra.mxu0 0.0
        %390 = vmatprep.subr.mxu0 0.0
        %391 = vmatpush1.msra.mxu0 0.0
        %392 = vmatprep.subr.mxu0 0.0
        %393 = vmatpush1.msra.mxu0 0.0
        %394 = vmatprep.subr.mxu0 0.0
        %395 = vmatpush1.msra.mxu0 0.0
        %396 = vmatprep.subr.mxu0 0.0
        %397 = vmatpush1.msra.mxu0 0.0
        %398 = vmatprep.mubr.f32.mxu0 0.0
        %399 = vmatmul.mubr.f32.gmra.mrb[0].mxu0 %v326
        %v400 = vpop.f32.mrb[0].mxu0
        %v401 = vadd.f32 0.0, %v400
        %v402 = vpop.f32.mrb[0].mxu0
        %403 = vmatprep.mubr.f32.mxu0 0.0
        %404 = vmatmul.mubr.f32.gmra.mrb[0].mxu0 %v329
        %v405 = vpop.f32.mrb[0].mxu0
        %v406 = vadd.f32 0.0, %v405
        %v407 = vpop.f32.mrb[0].mxu0
        %408 = vmatprep.mubr.f32.mxu0 0.0
        %409 = vmatmul.mubr.f32.gmra.mrb[0].mxu0 %v332
        %v410 = vpop.f32.mrb[0].mxu0
        %v411 = vadd.f32 0.0, %v410
        %v412 = vpop.f32.mrb[0].mxu0
        %413 = vdwg.mxu0
        %vm414 = vcmask 785408
        %415 = vst.msk [vmem:[%s208] sm:$0xff] %vm414, %v401
        %416 = vst.msk [vmem:[%s208 + $0x8] sm:$0xff] %vm414, %v406
        %417 = vst.msk [vmem:[%s208 + $0x10] sm:$0xff] %vm414, %v411
        %s418 = sand.u32 %s113, 1
        %s419 = scalar_lea.sflag [#allocation4], %s418
        %s420 = sand.u32 %s113, 1
        %s421 = smul.addr %s420, 24
        %s422 = scalar_lea.vmem [#allocation5], %s421
        // Predicated region
        $region37: #{tpu_custom_call.1} parent=31 // pred_check
          %p423 = pneg %p123
        $region38: #{tpu_custom_call.1} parent=31 // pred_check_branch
          %425 = sbr.rel (%p423) target = $region40
        $region39: #{tpu_custom_call.1} parent=31 // pred_region
          %s426 = smul.u32 3, %s23
          %s428 = ssub.s32 384, 384
          %429 = vsyncadd %s419, %s428
          %s430 = smul.addr %s22, 3
          %s431 = sadd.s32 %s426, %s430
          %s432 = smul.addr %s431, 128
          %s433 = scalar_lea.hbm %s3, %s432
          %s434 = sshll.u32 %s422, 4
          %s435 = int_to_ptr.vmem [resolvable:$true] %s434
          %440 = dma.vmem_to_hbm [thread:$0]  %s435, 384, %s433, %s419, 128, 128, 8
        $region40: #{tpu_custom_call.1} parent=31 // pred_fallthru
          _
      $region32: #{tpu_custom_call.1} parent=5 // pred_fallthru
        _
      %p441 = scmp.le.s32.totalorder 2, %s13
      // Predicated region
      $region41: #{tpu_custom_call.1} parent=5 // pred_check
        %p442 = pneg %p441
      $region42: #{tpu_custom_call.1} parent=5 // pred_check_branch
        %444 = sbr.rel (%p442) target = $region44
      $region43: #{tpu_custom_call.1} parent=5 // pred_region
        %s445 = ssub.s32 %s13, 2
        // Predicated region
        $region45: #{tpu_custom_call.1} parent=43 // pred_check
          %p446 = pneg %p129
        $region46: #{tpu_custom_call.1} parent=43 // pred_check_branch
          %448 = sbr.rel (%p446) target = $region48
        $region47: #{tpu_custom_call.1} parent=43 // pred_region
          %s449 = sand.u32 %s114, 1
          %s450 = scalar_lea.sflag [#allocation4], %s449
          %s451 = sand.u32 %s114, 1
          %s452 = smul.addr %s451, 24
          %s453 = scalar_lea.vmem [#allocation5], %s452
          %454 = dma.done %s450, 384
        $region48: #{tpu_custom_call.1} parent=43 // pred_fallthru
          _
      $region44: #{tpu_custom_call.1} parent=5 // pred_fallthru
        _
    $region6: #{tpu_custom_call.1} parent=1 // loop_footer
      %s17 = sadd.s32 1, %s13
    $region7: #{tpu_custom_call.1} parent=1 // loop_footer_branch
      %12 = sbr.rel target = $region3
    $region8: #{tpu_custom_call.1} parent=1 // loop_exit
      _
    %455 = vsyncpa [#allocation3], 1
    %s456 = scalar_lea.sflag [#allocation3], 1
    %457 = vsyncpa %s456, 1
    %458 = vsyncpa [#allocation4], 1
    %s459 = scalar_lea.sflag [#allocation4], 1
    %460 = vsyncpa %s459, 1

</llo_original>
